<compile_context>
chip_gen: v5e
topology: v5e:2x2
jax: 0.10.0
libtpu: 0.0.40
codegen_flags: <defaults>
</compile_context>

<pallas_src>
import functools
import math

import jax
import jax.numpy as jnp
from jax.experimental import pallas as pl
from jax.experimental.pallas import tpu as pltpu


def _cross_attention_kernel(xq_ref, xkv_ref,
                            wq_ref, wk_ref, wv_ref,
                            wproj_ref, bproj_ref,
                            out_ref,
                            *, num_heads, head_dim, scale):
    # xq_ref:   (1, N_q, Cq)  f32 block
    # xkv_ref:  (1, N_kv, Ckv) f32 block
    # wq_ref:   (Cq, C)   bf16, resident     wk_ref/wv_ref: (Ckv, C) bf16, resident
    # wproj_ref:(H, D, C) bf16, resident (proj weight in (in,out) layout, in split per head)
    # bproj_ref:(1, C)    f32, resident
    n_q = xq_ref.shape[1]
    c = wq_ref.shape[1]

    xq = xq_ref[0].astype(jnp.bfloat16)      # (N_q, Cq)
    xkv = xkv_ref[0].astype(jnp.bfloat16)    # (N_kv, Ckv)

    # qkv projections: bf16 MXU operands, f32 accumulation.  Scale hoisted onto q once.
    q = (jnp.dot(xq, wq_ref[...], preferred_element_type=jnp.float32)
         * scale).astype(jnp.bfloat16)                                    # (N_q, C)
    k = jnp.dot(xkv, wk_ref[...],
                preferred_element_type=jnp.float32).astype(jnp.bfloat16)  # (N_kv, C)
    v = jnp.dot(xkv, wv_ref[...],
                preferred_element_type=jnp.float32).astype(jnp.bfloat16)  # (N_kv, C)

    # Per-head attention with the output projection folded into the head loop:
    #   acc += (softmax(q_h k_h^T) v_h) @ Wproj[h]      -- no concat, no relayout.
    acc = jnp.zeros((n_q, c), jnp.float32)
    for h in range(num_heads):
        lo = h * head_dim
        hi = lo + head_dim
        qh = q[:, lo:hi]                                                  # (N_q, D)  bf16
        kh = k[:, lo:hi]                                                  # (N_kv, D) bf16
        vh = v[:, lo:hi]                                                  # (N_kv, D) bf16

        # scores = q_h @ k_h^T  (contract over D; no explicit transpose needed)
        s = jax.lax.dot_general(qh, kh, (((1,), (1,)), ((), ())),
                                preferred_element_type=jnp.float32)       # (N_q, N_kv)
        s = s - jnp.max(s, axis=-1, keepdims=True)
        p = jnp.exp(s)
        p = p * pl.reciprocal(jnp.sum(p, axis=-1, keepdims=True), approx=True)

        oh = jnp.dot(p.astype(jnp.bfloat16), vh,
                     preferred_element_type=jnp.float32)                  # (N_q, D)
        acc = acc + jnp.dot(oh.astype(jnp.bfloat16), wproj_ref[h],
                            preferred_element_type=jnp.float32)           # (N_q, C)

    out_ref[0] = (acc + bproj_ref[...]).astype(out_ref.dtype)


def cross_attention(x_q, x_kv, params, *, num_heads):
    B, N_q, C = x_q.shape
    _, N_kv, Ckv = x_kv.shape
    assert C % num_heads == 0
    D = C // num_heads
    scale = D ** (-0.5)

    # Pre-cast weights to bf16 once (native MXU rate, half the VMEM / DMA bytes).
    wq = params["wq"].astype(jnp.bfloat16)                                   # (Cq, C)
    wk = params["wk"].astype(jnp.bfloat16)                                   # (Ckv, C)
    wv = params["wv"].astype(jnp.bfloat16)                                   # (Ckv, C)
    wproj = params["wproj"].reshape(num_heads, D, C).astype(jnp.bfloat16)    # (H, D, C)
    bproj = params["bproj"].astype(jnp.float32)                              # (1, C)

    kern = functools.partial(_cross_attention_kernel,
                             num_heads=num_heads, head_dim=D, scale=scale)

    # Grid-invariant operands: whole-array resident in VMEM, copied once,
    # no per-step double buffering.
    resident = pl.BlockSpec(memory_space=pltpu.MemorySpace.VMEM)

    flops = B * (2 * N_q * C * C                      # wq
                 + 4 * N_kv * Ckv * C                 # wk + wv
                 + 4 * num_heads * N_q * N_kv * D     # scores + attn @ v
                 + 2 * N_q * C * C)                   # output projection (folded)
    transcendentals = B * num_heads * N_q * N_kv      # exp in softmax
    bytes_accessed = (4 * B * (N_q * C + N_kv * Ckv + N_q * C)
                      + 2 * (C * C + 2 * Ckv * C + C * C) + 4 * C)

    out = pl.pallas_call(
        kern,
        out_shape=jax.ShapeDtypeStruct((B, N_q, C), x_q.dtype),
        grid=(B,),
        in_specs=[
            pl.BlockSpec((1, N_q, C), lambda b: (b, 0, 0)),      # x_q
            pl.BlockSpec((1, N_kv, Ckv), lambda b: (b, 0, 0)),   # x_kv
            resident,    # wq
            resident,    # wk
            resident,    # wv
            resident,    # wproj (H, D, C)
            resident,    # bproj
        ],
        out_specs=pl.BlockSpec((1, N_q, C), lambda b: (b, 0, 0)),
        compiler_params=pltpu.CompilerParams(
            dimension_semantics=("parallel",),       # 2 grid steps -> both v7x TCs
            vmem_limit_bytes=64 * 1024 * 1024),
        cost_estimate=pl.CostEstimate(flops=flops,
                                      transcendentals=transcendentals,
                                      bytes_accessed=bytes_accessed),
    )(x_q, x_kv, wq, wk, wv, wproj, bproj)
    return out


def cross_attention_reference(x_q, x_kv, params, *, num_heads):
    """Pure-JAX f32 reference matching the PyTorch module."""
    B, N_q, C = x_q.shape
    _, N_kv, _ = x_kv.shape
    D = C // num_heads
    scale = D ** (-0.5)
    q = (x_q @ params["wq"]).reshape(B, N_q, num_heads, D).transpose(0, 2, 1, 3)
    k = (x_kv @ params["wk"]).reshape(B, N_kv, num_heads, D).transpose(0, 2, 1, 3)
    v = (x_kv @ params["wv"]).reshape(B, N_kv, num_heads, D).transpose(0, 2, 1, 3)
    attn = jax.nn.softmax(jnp.einsum("bhqd,bhkd->bhqk", q, k) * scale, axis=-1)
    o = jnp.einsum("bhqk,bhkd->bhqd", attn, v).transpose(0, 2, 1, 3).reshape(B, N_q, C)
    return o @ params["wproj"] + params["bproj"]


if __name__ == "__main__":
    B, N_q, N_kv = 2, 8, 16
    dim, kv_dim = 32, 48
    num_heads = 4

    key = jax.random.PRNGKey(0)
    ks = jax.random.split(key, 8)

    def init(k, shape, fan_in):
        bound = 1.0 / math.sqrt(fan_in)
        return jax.random.uniform(k, shape, jnp.float32, -bound, bound)

    params = {
        # Linear weights stored as (in, out) == torch weight transposed.
        "wq": init(ks[0], (dim, dim), dim),
        "wk": init(ks[1], (kv_dim, dim), kv_dim),
        "wv": init(ks[2], (kv_dim, dim), kv_dim),
        "wproj": init(ks[3], (dim, dim), dim),
        "bproj": init(ks[4], (1, dim), dim),
    }

    x_q = jax.random.normal(ks[5], (B, N_q, dim), jnp.float32)
    x_kv = jax.random.normal(ks[6], (B, N_kv, kv_dim), jnp.float32)

    out = cross_attention(x_q, x_kv, params, num_heads=num_heads)
    out = jax.block_until_ready(out)

    ref = cross_attention_reference(x_q, x_kv, params, num_heads=num_heads)
    assert out.shape == (B, N_q, dim)
    # bf16 MXU operands + approx reciprocal vs pure-f32 reference -> loosened tolerance.
    max_err = float(jnp.max(jnp.abs(out - ref)))
    assert jnp.allclose(out, ref, atol=3e-2, rtol=3e-2), (
        f"mismatch vs JAX reference, max abs err {max_err}")

    print("KERNEL_OK")
</pallas_src>

<mosaic_0001>
module attributes {stable_mosaic.version = 11 : i64} {
  func.func @_cross_attention_kernel(%arg0: i32, %arg1: memref<1x8x32xf32, #tpu.memory_space<vmem>>, %arg2: memref<1x16x48xf32, #tpu.memory_space<vmem>>, %arg3: memref<32x32xbf16, #tpu.memory_space<vmem>>, %arg4: memref<48x32xbf16, #tpu.memory_space<vmem>>, %arg5: memref<48x32xbf16, #tpu.memory_space<vmem>>, %arg6: memref<4x8x32xbf16, #tpu.memory_space<vmem>>, %arg7: memref<1x32xf32, #tpu.memory_space<vmem>>, %arg8: memref<1x8x32xf32, #tpu.memory_space<vmem>>) attributes {dimension_semantics = [#tpu.dimension_semantics<parallel>], iteration_bounds = array<i64: 2>, scalar_prefetch = 0 : i64, scratch_operands = 0 : i64, tpu.core_type = #tpu.core_type<tc>, window_params = [{transform_indices = @transform_0, window_bounds = array<i64: 1, 8, 32>}, {transform_indices = @transform_1, window_bounds = array<i64: 1, 16, 48>}, {pipeline_mode = #tpu.pipeline_mode<synchronous>, transform_indices = @transform_2, window_bounds = array<i64: 32, 32>}, {pipeline_mode = #tpu.pipeline_mode<synchronous>, transform_indices = @transform_3, window_bounds = array<i64: 48, 32>}, {pipeline_mode = #tpu.pipeline_mode<synchronous>, transform_indices = @transform_4, window_bounds = array<i64: 48, 32>}, {pipeline_mode = #tpu.pipeline_mode<synchronous>, transform_indices = @transform_5, window_bounds = array<i64: 4, 8, 32>}, {pipeline_mode = #tpu.pipeline_mode<synchronous>, transform_indices = @transform_6, window_bounds = array<i64: 1, 32>}, {transform_indices = @transform_7, window_bounds = array<i64: 1, 8, 32>}]} {
    %c0 = arith.constant 0 : index
    %c0_0 = arith.constant 0 : index
    %c0_1 = arith.constant 0 : index
    %0 = vector.load %arg1[%c0, %c0_0, %c0_1] : memref<1x8x32xf32, #tpu.memory_space<vmem>>, vector<1x8x32xf32>
    %1 = vector.shape_cast %0 : vector<1x8x32xf32> to vector<8x32xf32>
    %2 = arith.truncf %1 : vector<8x32xf32> to vector<8x32xbf16>
    %c0_2 = arith.constant 0 : index
    %c0_3 = arith.constant 0 : index
    %c0_4 = arith.constant 0 : index
    %3 = vector.load %arg2[%c0_2, %c0_3, %c0_4] : memref<1x16x48xf32, #tpu.memory_space<vmem>>, vector<1x16x48xf32>
    %4 = vector.shape_cast %3 : vector<1x16x48xf32> to vector<16x48xf32>
    %5 = arith.truncf %4 : vector<16x48xf32> to vector<16x48xbf16>
    %c0_5 = arith.constant 0 : index
    %c0_6 = arith.constant 0 : index
    %6 = vector.load %arg3[%c0_5, %c0_6] : memref<32x32xbf16, #tpu.memory_space<vmem>>, vector<32x32xbf16>
    %cst = arith.constant dense<0.000000e+00> : vector<8x32xf32>
    %7 = tpu.matmul %2, %6, %cst {dimension_numbers = #tpu.dot_dimension_numbers<[1], [0], [0], [1], [0, 0, 1, 1], [], []>} : vector<8x32xbf16>, vector<32x32xbf16>, vector<8x32xf32> -> vector<8x32xf32>
    %cst_7 = arith.constant 0.353553385 : f32
    %8 = vector.broadcast %cst_7 : f32 to vector<8x32xf32>
    %9 = arith.mulf %7, %8 : vector<8x32xf32>
    %10 = arith.truncf %9 : vector<8x32xf32> to vector<8x32xbf16>
    %c0_8 = arith.constant 0 : index
    %c0_9 = arith.constant 0 : index
    %11 = vector.load %arg4[%c0_8, %c0_9] : memref<48x32xbf16, #tpu.memory_space<vmem>>, vector<48x32xbf16>
    %cst_10 = arith.constant dense<0.000000e+00> : vector<16x32xf32>
    %12 = tpu.matmul %5, %11, %cst_10 {dimension_numbers = #tpu.dot_dimension_numbers<[1], [0], [0], [1], [0, 0, 1, 1], [], []>} : vector<16x48xbf16>, vector<48x32xbf16>, vector<16x32xf32> -> vector<16x32xf32>
    %13 = arith.truncf %12 : vector<16x32xf32> to vector<16x32xbf16>
    %c0_11 = arith.constant 0 : index
    %c0_12 = arith.constant 0 : index
    %14 = vector.load %arg5[%c0_11, %c0_12] : memref<48x32xbf16, #tpu.memory_space<vmem>>, vector<48x32xbf16>
    %cst_13 = arith.constant dense<0.000000e+00> : vector<16x32xf32>
    %15 = tpu.matmul %5, %14, %cst_13 {dimension_numbers = #tpu.dot_dimension_numbers<[1], [0], [0], [1], [0, 0, 1, 1], [], []>} : vector<16x48xbf16>, vector<48x32xbf16>, vector<16x32xf32> -> vector<16x32xf32>
    %16 = arith.truncf %15 : vector<16x32xf32> to vector<16x32xbf16>
    %cst_14 = arith.constant 0.000000e+00 : f32
    %17 = vector.broadcast %cst_14 : f32 to vector<8x32xf32>
    %18 = vector.extract_strided_slice %10 {offsets = [0, 0], sizes = [8, 8], strides = [1, 1]} : vector<8x32xbf16> to vector<8x8xbf16>
    %19 = vector.extract_strided_slice %13 {offsets = [0, 0], sizes = [16, 8], strides = [1, 1]} : vector<16x32xbf16> to vector<16x8xbf16>
    %20 = vector.extract_strided_slice %16 {offsets = [0, 0], sizes = [16, 8], strides = [1, 1]} : vector<16x32xbf16> to vector<16x8xbf16>
    %cst_15 = arith.constant dense<0.000000e+00> : vector<8x16xf32>
    %21 = tpu.matmul %18, %19, %cst_15 {dimension_numbers = #tpu.dot_dimension_numbers<[1], [1], [0], [0], [0, 0, 1, 0], [], []>} : vector<8x8xbf16>, vector<16x8xbf16>, vector<8x16xf32> -> vector<8x16xf32>
    %cst_16 = arith.constant dense<0xFF800000> : vector<8xf32>
    %22 = vector.multi_reduction <maximumf>, %21, %cst_16 [1] : vector<8x16xf32> to vector<8xf32>
    %23 = vector.shape_cast %22 : vector<8xf32> to vector<8x1xf32>
    %24 = vector.broadcast %23 : vector<8x1xf32> to vector<8x16xf32>
    %25 = arith.subf %21, %24 : vector<8x16xf32>
    %26 = math.exp %25 : vector<8x16xf32>
    %cst_17 = arith.constant dense<0.000000e+00> : vector<8xf32>
    %27 = vector.multi_reduction <add>, %26, %cst_17 [1] : vector<8x16xf32> to vector<8xf32>
    %28 = vector.shape_cast %27 : vector<8xf32> to vector<8x1xf32>
    %29 = tpu.reciprocal %28 {approx = true} : vector<8x1xf32> -> vector<8x1xf32>
    %30 = vector.broadcast %29 : vector<8x1xf32> to vector<8x16xf32>
    %31 = arith.mulf %26, %30 : vector<8x16xf32>
    %32 = arith.truncf %31 : vector<8x16xf32> to vector<8x16xbf16>
    %cst_18 = arith.constant dense<0.000000e+00> : vector<8x8xf32>
    %33 = tpu.matmul %32, %20, %cst_18 {dimension_numbers = #tpu.dot_dimension_numbers<[1], [0], [0], [1], [0, 0, 1, 1], [], []>} : vector<8x16xbf16>, vector<16x8xbf16>, vector<8x8xf32> -> vector<8x8xf32>
    %34 = arith.truncf %33 : vector<8x8xf32> to vector<8x8xbf16>
    %c0_19 = arith.constant 0 : index
    %c0_20 = arith.constant 0 : index
    %c0_21 = arith.constant 0 : index
    %35 = vector.load %arg6[%c0_19, %c0_20, %c0_21] : memref<4x8x32xbf16, #tpu.memory_space<vmem>>, vector<1x8x32xbf16>
    %36 = vector.shape_cast %35 : vector<1x8x32xbf16> to vector<8x32xbf16>
    %cst_22 = arith.constant dense<0.000000e+00> : vector<8x32xf32>
    %37 = tpu.matmul %34, %36, %cst_22 {dimension_numbers = #tpu.dot_dimension_numbers<[1], [0], [0], [1], [0, 0, 1, 1], [], []>} : vector<8x8xbf16>, vector<8x32xbf16>, vector<8x32xf32> -> vector<8x32xf32>
    %38 = arith.addf %17, %37 : vector<8x32xf32>
    %39 = vector.extract_strided_slice %10 {offsets = [0, 8], sizes = [8, 8], strides = [1, 1]} : vector<8x32xbf16> to vector<8x8xbf16>
    %40 = vector.extract_strided_slice %13 {offsets = [0, 8], sizes = [16, 8], strides = [1, 1]} : vector<16x32xbf16> to vector<16x8xbf16>
    %41 = vector.extract_strided_slice %16 {offsets = [0, 8], sizes = [16, 8], strides = [1, 1]} : vector<16x32xbf16> to vector<16x8xbf16>
    %cst_23 = arith.constant dense<0.000000e+00> : vector<8x16xf32>
    %42 = tpu.matmul %39, %40, %cst_23 {dimension_numbers = #tpu.dot_dimension_numbers<[1], [1], [0], [0], [0, 0, 1, 0], [], []>} : vector<8x8xbf16>, vector<16x8xbf16>, vector<8x16xf32> -> vector<8x16xf32>
    %cst_24 = arith.constant dense<0xFF800000> : vector<8xf32>
    %43 = vector.multi_reduction <maximumf>, %42, %cst_24 [1] : vector<8x16xf32> to vector<8xf32>
    %44 = vector.shape_cast %43 : vector<8xf32> to vector<8x1xf32>
    %45 = vector.broadcast %44 : vector<8x1xf32> to vector<8x16xf32>
    %46 = arith.subf %42, %45 : vector<8x16xf32>
    %47 = math.exp %46 : vector<8x16xf32>
    %cst_25 = arith.constant dense<0.000000e+00> : vector<8xf32>
    %48 = vector.multi_reduction <add>, %47, %cst_25 [1] : vector<8x16xf32> to vector<8xf32>
    %49 = vector.shape_cast %48 : vector<8xf32> to vector<8x1xf32>
    %50 = tpu.reciprocal %49 {approx = true} : vector<8x1xf32> -> vector<8x1xf32>
    %51 = vector.broadcast %50 : vector<8x1xf32> to vector<8x16xf32>
    %52 = arith.mulf %47, %51 : vector<8x16xf32>
    %53 = arith.truncf %52 : vector<8x16xf32> to vector<8x16xbf16>
    %cst_26 = arith.constant dense<0.000000e+00> : vector<8x8xf32>
    %54 = tpu.matmul %53, %41, %cst_26 {dimension_numbers = #tpu.dot_dimension_numbers<[1], [0], [0], [1], [0, 0, 1, 1], [], []>} : vector<8x16xbf16>, vector<16x8xbf16>, vector<8x8xf32> -> vector<8x8xf32>
    %55 = arith.truncf %54 : vector<8x8xf32> to vector<8x8xbf16>
    %c1 = arith.constant 1 : index
    %c0_27 = arith.constant 0 : index
    %c0_28 = arith.constant 0 : index
    %56 = vector.load %arg6[%c1, %c0_27, %c0_28] : memref<4x8x32xbf16, #tpu.memory_space<vmem>>, vector<1x8x32xbf16>
    %57 = vector.shape_cast %56 : vector<1x8x32xbf16> to vector<8x32xbf16>
    %cst_29 = arith.constant dense<0.000000e+00> : vector<8x32xf32>
    %58 = tpu.matmul %55, %57, %cst_29 {dimension_numbers = #tpu.dot_dimension_numbers<[1], [0], [0], [1], [0, 0, 1, 1], [], []>} : vector<8x8xbf16>, vector<8x32xbf16>, vector<8x32xf32> -> vector<8x32xf32>
    %59 = arith.addf %38, %58 : vector<8x32xf32>
    %60 = vector.extract_strided_slice %10 {offsets = [0, 16], sizes = [8, 8], strides = [1, 1]} : vector<8x32xbf16> to vector<8x8xbf16>
    %61 = vector.extract_strided_slice %13 {offsets = [0, 16], sizes = [16, 8], strides = [1, 1]} : vector<16x32xbf16> to vector<16x8xbf16>
    %62 = vector.extract_strided_slice %16 {offsets = [0, 16], sizes = [16, 8], strides = [1, 1]} : vector<16x32xbf16> to vector<16x8xbf16>
    %cst_30 = arith.constant dense<0.000000e+00> : vector<8x16xf32>
    %63 = tpu.matmul %60, %61, %cst_30 {dimension_numbers = #tpu.dot_dimension_numbers<[1], [1], [0], [0], [0, 0, 1, 0], [], []>} : vector<8x8xbf16>, vector<16x8xbf16>, vector<8x16xf32> -> vector<8x16xf32>
    %cst_31 = arith.constant dense<0xFF800000> : vector<8xf32>
    %64 = vector.multi_reduction <maximumf>, %63, %cst_31 [1] : vector<8x16xf32> to vector<8xf32>
    %65 = vector.shape_cast %64 : vector<8xf32> to vector<8x1xf32>
    %66 = vector.broadcast %65 : vector<8x1xf32> to vector<8x16xf32>
    %67 = arith.subf %63, %66 : vector<8x16xf32>
    %68 = math.exp %67 : vector<8x16xf32>
    %cst_32 = arith.constant dense<0.000000e+00> : vector<8xf32>
    %69 = vector.multi_reduction <add>, %68, %cst_32 [1] : vector<8x16xf32> to vector<8xf32>
    %70 = vector.shape_cast %69 : vector<8xf32> to vector<8x1xf32>
    %71 = tpu.reciprocal %70 {approx = true} : vector<8x1xf32> -> vector<8x1xf32>
    %72 = vector.broadcast %71 : vector<8x1xf32> to vector<8x16xf32>
    %73 = arith.mulf %68, %72 : vector<8x16xf32>
    %74 = arith.truncf %73 : vector<8x16xf32> to vector<8x16xbf16>
    %cst_33 = arith.constant dense<0.000000e+00> : vector<8x8xf32>
    %75 = tpu.matmul %74, %62, %cst_33 {dimension_numbers = #tpu.dot_dimension_numbers<[1], [0], [0], [1], [0, 0, 1, 1], [], []>} : vector<8x16xbf16>, vector<16x8xbf16>, vector<8x8xf32> -> vector<8x8xf32>
    %76 = arith.truncf %75 : vector<8x8xf32> to vector<8x8xbf16>
    %c2 = arith.constant 2 : index
    %c0_34 = arith.constant 0 : index
    %c0_35 = arith.constant 0 : index
    %77 = vector.load %arg6[%c2, %c0_34, %c0_35] : memref<4x8x32xbf16, #tpu.memory_space<vmem>>, vector<1x8x32xbf16>
    %78 = vector.shape_cast %77 : vector<1x8x32xbf16> to vector<8x32xbf16>
    %cst_36 = arith.constant dense<0.000000e+00> : vector<8x32xf32>
    %79 = tpu.matmul %76, %78, %cst_36 {dimension_numbers = #tpu.dot_dimension_numbers<[1], [0], [0], [1], [0, 0, 1, 1], [], []>} : vector<8x8xbf16>, vector<8x32xbf16>, vector<8x32xf32> -> vector<8x32xf32>
    %80 = arith.addf %59, %79 : vector<8x32xf32>
    %81 = vector.extract_strided_slice %10 {offsets = [0, 24], sizes = [8, 8], strides = [1, 1]} : vector<8x32xbf16> to vector<8x8xbf16>
    %82 = vector.extract_strided_slice %13 {offsets = [0, 24], sizes = [16, 8], strides = [1, 1]} : vector<16x32xbf16> to vector<16x8xbf16>
    %83 = vector.extract_strided_slice %16 {offsets = [0, 24], sizes = [16, 8], strides = [1, 1]} : vector<16x32xbf16> to vector<16x8xbf16>
    %cst_37 = arith.constant dense<0.000000e+00> : vector<8x16xf32>
    %84 = tpu.matmul %81, %82, %cst_37 {dimension_numbers = #tpu.dot_dimension_numbers<[1], [1], [0], [0], [0, 0, 1, 0], [], []>} : vector<8x8xbf16>, vector<16x8xbf16>, vector<8x16xf32> -> vector<8x16xf32>
    %cst_38 = arith.constant dense<0xFF800000> : vector<8xf32>
    %85 = vector.multi_reduction <maximumf>, %84, %cst_38 [1] : vector<8x16xf32> to vector<8xf32>
    %86 = vector.shape_cast %85 : vector<8xf32> to vector<8x1xf32>
    %87 = vector.broadcast %86 : vector<8x1xf32> to vector<8x16xf32>
    %88 = arith.subf %84, %87 : vector<8x16xf32>
    %89 = math.exp %88 : vector<8x16xf32>
    %cst_39 = arith.constant dense<0.000000e+00> : vector<8xf32>
    %90 = vector.multi_reduction <add>, %89, %cst_39 [1] : vector<8x16xf32> to vector<8xf32>
    %91 = vector.shape_cast %90 : vector<8xf32> to vector<8x1xf32>
    %92 = tpu.reciprocal %91 {approx = true} : vector<8x1xf32> -> vector<8x1xf32>
    %93 = vector.broadcast %92 : vector<8x1xf32> to vector<8x16xf32>
    %94 = arith.mulf %89, %93 : vector<8x16xf32>
    %95 = arith.truncf %94 : vector<8x16xf32> to vector<8x16xbf16>
    %cst_40 = arith.constant dense<0.000000e+00> : vector<8x8xf32>
    %96 = tpu.matmul %95, %83, %cst_40 {dimension_numbers = #tpu.dot_dimension_numbers<[1], [0], [0], [1], [0, 0, 1, 1], [], []>} : vector<8x16xbf16>, vector<16x8xbf16>, vector<8x8xf32> -> vector<8x8xf32>
    %97 = arith.truncf %96 : vector<8x8xf32> to vector<8x8xbf16>
    %c3 = arith.constant 3 : index
    %c0_41 = arith.constant 0 : index
    %c0_42 = arith.constant 0 : index
    %98 = vector.load %arg6[%c3, %c0_41, %c0_42] : memref<4x8x32xbf16, #tpu.memory_space<vmem>>, vector<1x8x32xbf16>
    %99 = vector.shape_cast %98 : vector<1x8x32xbf16> to vector<8x32xbf16>
    %cst_43 = arith.constant dense<0.000000e+00> : vector<8x32xf32>
    %100 = tpu.matmul %97, %99, %cst_43 {dimension_numbers = #tpu.dot_dimension_numbers<[1], [0], [0], [1], [0, 0, 1, 1], [], []>} : vector<8x8xbf16>, vector<8x32xbf16>, vector<8x32xf32> -> vector<8x32xf32>
    %101 = arith.addf %80, %100 : vector<8x32xf32>
    %c0_44 = arith.constant 0 : index
    %c0_45 = arith.constant 0 : index
    %102 = vector.load %arg7[%c0_44, %c0_45] : memref<1x32xf32, #tpu.memory_space<vmem>>, vector<1x32xf32>
    %103 = vector.broadcast %102 : vector<1x32xf32> to vector<8x32xf32>
    %104 = arith.addf %101, %103 : vector<8x32xf32>
    %c0_46 = arith.constant 0 : index
    %c0_47 = arith.constant 0 : index
    %c0_48 = arith.constant 0 : index
    %105 = vector.load %arg8[%c0_46, %c0_47, %c0_48] : memref<1x8x32xf32, #tpu.memory_space<vmem>>, vector<1x8x32xf32>
    %106 = vector.shape_cast %105 : vector<1x8x32xf32> to vector<8x32xf32>
    %107 = vector.shape_cast %104 : vector<8x32xf32> to vector<1x8x32xf32>
    tpu.vector_store %arg8[%c0_46, %c0_47, %c0_48], %107 {strides = array<i32>} : memref<1x8x32xf32, #tpu.memory_space<vmem>>, vector<1x8x32xf32>,
    return
  }
  func.func @transform_0(%arg0: i32) -> (i32, i32, i32) {
    %c0_i32 = arith.constant 0 : i32
    %c0_i32_0 = arith.constant 0 : i32
    %c0_i32_1 = arith.constant 0 : i32
    return %arg0, %c0_i32, %c0_i32_0 : i32, i32, i32
  }
  func.func @transform_1(%arg0: i32) -> (i32, i32, i32) {
    %c0_i32 = arith.constant 0 : i32
    %c0_i32_0 = arith.constant 0 : i32
    %c0_i32_1 = arith.constant 0 : i32
    return %arg0, %c0_i32, %c0_i32_0 : i32, i32, i32
  }
  func.func @transform_2(%arg0: i32) -> (i32, i32) {
    %c0_i32 = arith.constant 0 : i32
    %c0_i32_0 = arith.constant 0 : i32
    %c0_i32_1 = arith.constant 0 : i32
    return %c0_i32, %c0_i32_0 : i32, i32
  }
  func.func @transform_3(%arg0: i32) -> (i32, i32) {
    %c0_i32 = arith.constant 0 : i32
    %c0_i32_0 = arith.constant 0 : i32
    %c0_i32_1 = arith.constant 0 : i32
    return %c0_i32, %c0_i32_0 : i32, i32
  }
  func.func @transform_4(%arg0: i32) -> (i32, i32) {
    %c0_i32 = arith.constant 0 : i32
    %c0_i32_0 = arith.constant 0 : i32
    %c0_i32_1 = arith.constant 0 : i32
    return %c0_i32, %c0_i32_0 : i32, i32
  }
  func.func @transform_5(%arg0: i32) -> (i32, i32, i32) {
    %c0_i32 = arith.constant 0 : i32
    %c0_i32_0 = arith.constant 0 : i32
    %c0_i32_1 = arith.constant 0 : i32
    %c0_i32_2 = arith.constant 0 : i32
    return %c0_i32, %c0_i32_0, %c0_i32_1 : i32, i32, i32
  }
  func.func @transform_6(%arg0: i32) -> (i32, i32) {
    %c0_i32 = arith.constant 0 : i32
    %c0_i32_0 = arith.constant 0 : i32
    %c0_i32_1 = arith.constant 0 : i32
    return %c0_i32, %c0_i32_0 : i32, i32
  }
  func.func @transform_7(%arg0: i32) -> (i32, i32, i32) {
    %c0_i32 = arith.constant 0 : i32
    %c0_i32_0 = arith.constant 0 : i32
    %c0_i32_1 = arith.constant 0 : i32
    return %arg0, %c0_i32, %c0_i32_0 : i32, i32, i32
  }
}

</mosaic_0001>

<llo_original>
// kernel: tpu_custom_call.1
$region0: #{tpu_custom_call.1}
  #allocation0 [shape = 'u32[]', space=smem, size = 0x4, offset = 0x4, fixed_abs, tag = 'smem constant byte address 0x4 - core index']
  #allocation1 [shape = 'u32[72,128]{1,0:T(1,128)}', space=vmem, size = 0x9000, scoped, tag = 'internal scratch']
  %s0 = inlined_call_operand.vmem [shape: f32[2,8,32], index: 0, kind: input, shape index: {}]
  %s1 = inlined_call_operand.vmem [shape: f32[2,16,48], index: 1, kind: input, shape index: {}]
  %s2 = inlined_call_operand.vmem [shape: bf16[32,32], index: 2, kind: input, shape index: {}]
  %s3 = inlined_call_operand.vmem [shape: bf16[48,32], index: 3, kind: input, shape index: {}]
  %s4 = inlined_call_operand.vmem [shape: bf16[48,32], index: 4, kind: input, shape index: {}]
  %s5 = inlined_call_operand.hbm [shape: bf16[4,8,32], index: 5, kind: input, shape index: {}]
  %s6 = inlined_call_operand.vmem [shape: f32[1,32], index: 6, kind: input, shape index: {}]
  %s7 = inlined_call_operand.hbm [shape: f32[2,8,32], index: 7, kind: output, shape index: {}]
  %s8 = sld [smem:[#allocation0]]
  $region65: #{tpu_custom_call.1} parent=0
    _
  %s10 = ssub.s32 1, %s8
  %s11 = scalar_select 0, %s10, %s8
  $region1: #{tpu_custom_call.1} parent=0
    #allocation2 [shape = 'u8[8192]{0}', space=vmem, size = 0x2000, scoped, tag = 'input window, operand 5, single buffered']
    #allocation3 [shape = 's32[2]{0}', space=sflag, size = 0x8, scoped, tag = 'scoped memory for tpu_custom_call.1']
    #allocation4 [shape = 's32[2]{0}', space=sflag, size = 0x8, scoped, tag = 'scoped memory for tpu_custom_call.1']
    #allocation5 [shape = 'u8[8192]{0}', space=vmem, size = 0x2000, scoped, tag = 'output window, operand 0']
    %12 = vsyncpa [#allocation3], 0
    %13 = vsyncpa [#allocation4], 0
    %s14 = scalar_lea.sflag [#allocation4], 1
    %15 = vsyncpa %s14, 0
    loop: start=0, step=1, limit=4
    $region2: #{tpu_custom_call.1} parent=1 // loop_pre_header
      _
    $region3: #{tpu_custom_call.1} parent=1 // loop_header
      %s17 = sphi 0, %s21
      %p18 = scmp.ge.s32.totalorder %s17, 4
      %s27 = sphi 0, %s29
      %s30 = sphi 0, %s27
      %s31 = sphi 0, %s30
      %s47 = sphi 0, %s31
      %s53 = sphi 0, %s55
      %s56 = sphi 0, %s53
      %s57 = sphi 0, %s56
      %s73 = sphi 0, %s57
      %s77 = sphi 0, %s77
      %s79 = sphi 0, %s77
      %s80 = sphi 0, %s79
      %s94 = sphi 0, %s80
      %s98 = sphi 0, %s98
      %s100 = sphi 0, %s98
      %s101 = sphi 0, %s100
      %s115 = sphi 0, %s101
      %s119 = sphi 0, %s119
      %s121 = sphi 0, %s119
      %s122 = sphi 0, %s121
      %s136 = sphi 0, %s122
      %s140 = sphi 0, %s140
      %s142 = sphi 0, %s140
      %s143 = sphi 0, %s142
      %s157 = sphi 0, %s143
      %s161 = sphi 0, %s161
      %s163 = sphi 0, %s161
      %s164 = sphi 0, %s163
      %s178 = sphi 0, %s164
      %s184 = sphi 0, %s186
      %s187 = sphi 0, %s184
      %s188 = sphi 0, %s187
      %s204 = sphi 0, %s188
    $region4: #{tpu_custom_call.1} parent=1 // loop_header_branch
      %20 = sbr.rel (%p18) target = $region8
    $region5: #{tpu_custom_call.1} parent=1 // loop_body
      %s22 = ssub.s32 %s17, 1
      %s23 = ssub.s32 %s17, 2
      %s24 = sadd.s32 %s17, 1
      %s25 = ssub.s32 %s17, %s24
      %p26 = scmp.eq.s32.totalorder %s25, 0
      %s28 = sadd.s32 %s27, 1
      %s29 = scalar_select %p26, %s27, %s28
      %p32 = pneg %p26
      %p33 = scmp.eq.s32.totalorder %s17, 1
      %p34 = por %p32, %p33
      %p35 = scmp.ne.s32.totalorder %s27, %s30
      %p36 = scmp.eq.s32.totalorder %s17, 0
      %p37 = por %p35, %p36
      %p38 = scmp.ne.s32.totalorder %s27, %s30
      %p39 = scmp.eq.s32.totalorder %s22, 1
      %p40 = por %p38, %p39
      %p41 = scmp.ne.s32.totalorder %s30, %s31
      %p42 = scmp.eq.s32.totalorder %s22, 0
      %p43 = por %p41, %p42
      %p44 = scmp.ne.s32.totalorder %s30, %s31
      %p45 = scmp.eq.s32.totalorder %s23, 1
      %p46 = por %p44, %p45
      %p48 = scmp.ne.s32.totalorder %s31, %s47
      %p49 = scmp.eq.s32.totalorder %s23, 0
      %p50 = por %p48, %p49
      %s51 = ssub.s32 %s17, %s24
      %p52 = scmp.eq.s32.totalorder %s51, 0
      %s54 = sadd.s32 %s53, 1
      %s55 = scalar_select %p52, %s53, %s54
      %p58 = pneg %p52
      %p59 = scmp.eq.s32.totalorder %s17, 1
      %p60 = por %p58, %p59
      %p61 = scmp.ne.s32.totalorder %s53, %s56
      %p62 = scmp.eq.s32.totalorder %s17, 0
      %p63 = por %p61, %p62
      %p64 = scmp.ne.s32.totalorder %s53, %s56
      %p65 = scmp.eq.s32.totalorder %s22, 1
      %p66 = por %p64, %p65
      %p67 = scmp.ne.s32.totalorder %s56, %s57
      %p68 = scmp.eq.s32.totalorder %s22, 0
      %p69 = por %p67, %p68
      %p70 = scmp.ne.s32.totalorder %s56, %s57
      %p71 = scmp.eq.s32.totalorder %s23, 1
      %p72 = por %p70, %p71
      %p74 = scmp.ne.s32.totalorder %s57, %s73
      %p75 = scmp.eq.s32.totalorder %s23, 0
      %p76 = por %p74, %p75
      %s78 = sadd.s32 %s77, 1
      %p81 = scmp.eq.s32.totalorder %s17, 1
      %p82 = scmp.ne.s32.totalorder %s77, %s79
      %p83 = scmp.eq.s32.totalorder %s17, 0
      %p84 = por %p82, %p83
      %p85 = scmp.ne.s32.totalorder %s77, %s79
      %p86 = scmp.eq.s32.totalorder %s22, 1
      %p87 = por %p85, %p86
      %p88 = scmp.ne.s32.totalorder %s79, %s80
      %p89 = scmp.eq.s32.totalorder %s22, 0
      %p90 = por %p88, %p89
      %p91 = scmp.ne.s32.totalorder %s79, %s80
      %p92 = scmp.eq.s32.totalorder %s23, 1
      %p93 = por %p91, %p92
      %p95 = scmp.ne.s32.totalorder %s80, %s94
      %p96 = scmp.eq.s32.totalorder %s23, 0
      %p97 = por %p95, %p96
      %s99 = sadd.s32 %s98, 1
      %p102 = scmp.eq.s32.totalorder %s17, 1
      %p103 = scmp.ne.s32.totalorder %s98, %s100
      %p104 = scmp.eq.s32.totalorder %s17, 0
      %p105 = por %p103, %p104
      %p106 = scmp.ne.s32.totalorder %s98, %s100
      %p107 = scmp.eq.s32.totalorder %s22, 1
      %p108 = por %p106, %p107
      %p109 = scmp.ne.s32.totalorder %s100, %s101
      %p110 = scmp.eq.s32.totalorder %s22, 0
      %p111 = por %p109, %p110
      %p112 = scmp.ne.s32.totalorder %s100, %s101
      %p113 = scmp.eq.s32.totalorder %s23, 1
      %p114 = por %p112, %p113
      %p116 = scmp.ne.s32.totalorder %s101, %s115
      %p117 = scmp.eq.s32.totalorder %s23, 0
      %p118 = por %p116, %p117
      %s120 = sadd.s32 %s119, 1
      %p123 = scmp.eq.s32.totalorder %s17, 1
      %p124 = scmp.ne.s32.totalorder %s119, %s121
      %p125 = scmp.eq.s32.totalorder %s17, 0
      %p126 = por %p124, %p125
      %p127 = scmp.ne.s32.totalorder %s119, %s121
      %p128 = scmp.eq.s32.totalorder %s22, 1
      %p129 = por %p127, %p128
      %p130 = scmp.ne.s32.totalorder %s121, %s122
      %p131 = scmp.eq.s32.totalorder %s22, 0
      %p132 = por %p130, %p131
      %p133 = scmp.ne.s32.totalorder %s121, %s122
      %p134 = scmp.eq.s32.totalorder %s23, 1
      %p135 = por %p133, %p134
      %p137 = scmp.ne.s32.totalorder %s122, %s136
      %p138 = scmp.eq.s32.totalorder %s23, 0
      %p139 = por %p137, %p138
      %s141 = sadd.s32 %s140, 1
      %p144 = scmp.eq.s32.totalorder %s17, 1
      %p145 = scmp.ne.s32.totalorder %s140, %s142
      %p146 = scmp.eq.s32.totalorder %s17, 0
      %p147 = por %p145, %p146
      %p148 = scmp.ne.s32.totalorder %s140, %s142
      %p149 = scmp.eq.s32.totalorder %s22, 1
      %p150 = por %p148, %p149
      %p151 = scmp.ne.s32.totalorder %s142, %s143
      %p152 = scmp.eq.s32.totalorder %s22, 0
      %p153 = por %p151, %p152
      %p154 = scmp.ne.s32.totalorder %s142, %s143
      %p155 = scmp.eq.s32.totalorder %s23, 1
      %p156 = por %p154, %p155
      %p158 = scmp.ne.s32.totalorder %s143, %s157
      %p159 = scmp.eq.s32.totalorder %s23, 0
      %p160 = por %p158, %p159
      %s162 = sadd.s32 %s161, 1
      %p165 = scmp.eq.s32.totalorder %s17, 1
      %p166 = scmp.ne.s32.totalorder %s161, %s163
      %p167 = scmp.eq.s32.totalorder %s17, 0
      %p168 = por %p166, %p167
      %p169 = scmp.ne.s32.totalorder %s161, %s163
      %p170 = scmp.eq.s32.totalorder %s22, 1
      %p171 = por %p169, %p170
      %p172 = scmp.ne.s32.totalorder %s163, %s164
      %p173 = scmp.eq.s32.totalorder %s22, 0
      %p174 = por %p172, %p173
      %p175 = scmp.ne.s32.totalorder %s163, %s164
      %p176 = scmp.eq.s32.totalorder %s23, 1
      %p177 = por %p175, %p176
      %p179 = scmp.ne.s32.totalorder %s164, %s178
      %p180 = scmp.eq.s32.totalorder %s23, 0
      %p181 = por %p179, %p180
      %s182 = ssub.s32 %s17, %s24
      %p183 = scmp.eq.s32.totalorder %s182, 0
      %s185 = sadd.s32 %s184, 1
      %s186 = scalar_select %p183, %s184, %s185
      %p189 = pneg %p183
      %p190 = scmp.eq.s32.totalorder %s17, 1
      %p191 = por %p189, %p190
      %p192 = scmp.ne.s32.totalorder %s184, %s187
      %p193 = scmp.eq.s32.totalorder %s17, 0
      %p194 = por %p192, %p193
      %p195 = scmp.ne.s32.totalorder %s184, %s187
      %p196 = scmp.eq.s32.totalorder %s22, 1
      %p197 = por %p195, %p196
      %p198 = scmp.ne.s32.totalorder %s187, %s188
      %p199 = scmp.eq.s32.totalorder %s22, 0
      %p200 = por %p198, %p199
      %p201 = scmp.ne.s32.totalorder %s187, %s188
      %p202 = scmp.eq.s32.totalorder %s23, 1
      %p203 = por %p201, %p202
      %p205 = scmp.ne.s32.totalorder %s188, %s204
      %p206 = scmp.eq.s32.totalorder %s23, 0
      %p207 = por %p205, %p206
      %p208 = scmp.le.s32.totalorder 1, %s17
      %p209 = scmp.lt.s32.totalorder %s17, 3
      %p210 = pnand %p208, %p209
      %p211 = pneg %p210
      // Predicated region
      $region9: #{tpu_custom_call.1} parent=5 // pred_check
        _
      $region10: #{tpu_custom_call.1} parent=5 // pred_check_branch
        %213 = sbr.rel (%p210) target = $region12
      $region11: #{tpu_custom_call.1} parent=5 // pred_region
        %s214 = ssub.s32 %s17, 1
        // Predicated region
        $region13: #{tpu_custom_call.1} parent=11 // pred_check
          %p215 = pneg %p90
        $region14: #{tpu_custom_call.1} parent=11 // pred_check_branch
          %217 = sbr.rel (%p215) target = $region16
        $region15: #{tpu_custom_call.1} parent=11 // pred_region
          _
        $region16: #{tpu_custom_call.1} parent=11 // pred_fallthru
          _
        // Predicated region
        $region17: #{tpu_custom_call.1} parent=11 // pred_check
          %p218 = pneg %p111
        $region18: #{tpu_custom_call.1} parent=11 // pred_check_branch
          %220 = sbr.rel (%p218) target = $region20
        $region19: #{tpu_custom_call.1} parent=11 // pred_region
          _
        $region20: #{tpu_custom_call.1} parent=11 // pred_fallthru
          _
        // Predicated region
        $region21: #{tpu_custom_call.1} parent=11 // pred_check
          %p221 = pneg %p132
        $region22: #{tpu_custom_call.1} parent=11 // pred_check_branch
          %223 = sbr.rel (%p221) target = $region24
        $region23: #{tpu_custom_call.1} parent=11 // pred_region
          _
        $region24: #{tpu_custom_call.1} parent=11 // pred_fallthru
          _
        // Predicated region
        $region25: #{tpu_custom_call.1} parent=11 // pred_check
          %p224 = pneg %p153
        $region26: #{tpu_custom_call.1} parent=11 // pred_check_branch
          %226 = sbr.rel (%p224) target = $region28
        $region27: #{tpu_custom_call.1} parent=11 // pred_region
          %228 = vsyncadd [#allocation3], 0
          %s229 = sshll.u32 %s5, 4
          %s230 = int_to_ptr.hbm [resolvable:$true] %s229
          %s231 = sshll.u32 [#allocation2], 4
          %s232 = int_to_ptr.vmem [resolvable:$true] %s231
          %237 = dma.hbm_to_vmem [thread:$0]  %s230, 256, %s232, [#allocation3], 64, 64, 4
        $region28: #{tpu_custom_call.1} parent=11 // pred_fallthru
          _
        // Predicated region
        $region29: #{tpu_custom_call.1} parent=11 // pred_check
          %p238 = pneg %p174
        $region30: #{tpu_custom_call.1} parent=11 // pred_check_branch
          %240 = sbr.rel (%p238) target = $region32
        $region31: #{tpu_custom_call.1} parent=11 // pred_region
          _
        $region32: #{tpu_custom_call.1} parent=11 // pred_fallthru
          _
      $region12: #{tpu_custom_call.1} parent=5 // pred_fallthru
        _
      %p241 = scmp.lt.s32.totalorder %s17, 2
      // Predicated region
      $region33: #{tpu_custom_call.1} parent=5 // pred_check
        %p242 = pneg %p241
      $region34: #{tpu_custom_call.1} parent=5 // pred_check_branch
        %244 = sbr.rel (%p242) target = $region36
      $region35: #{tpu_custom_call.1} parent=5 // pred_region
        // Predicated region
        $region37: #{tpu_custom_call.1} parent=35 // pred_check
          %p245 = pneg %p37
        $region38: #{tpu_custom_call.1} parent=35 // pred_check_branch
          %247 = sbr.rel (%p245) target = $region40
        $region39: #{tpu_custom_call.1} parent=35 // pred_region
          %p248 = scmp.lt.s32.totalorder %s17, 1
          %s249 = scalar_select %p248, %s17, 1
          %s250 = smul.addr %s249, 8
          %s251 = scalar_lea.vmem %s0, %s250
        $region40: #{tpu_custom_call.1} parent=35 // pred_fallthru
          _
        // Predicated region
        $region41: #{tpu_custom_call.1} parent=35 // pred_check
          %p252 = pneg %p63
        $region42: #{tpu_custom_call.1} parent=35 // pred_check_branch
          %254 = sbr.rel (%p252) target = $region44
        $region43: #{tpu_custom_call.1} parent=35 // pred_region
          %p255 = scmp.lt.s32.totalorder %s17, 1
          %s256 = scalar_select %p255, %s17, 1
          %s257 = smul.addr %s256, 2
          %s258 = smul.addr %s257, 8
          %s259 = scalar_lea.vmem %s1, %s258
        $region44: #{tpu_custom_call.1} parent=35 // pred_fallthru
          _
      $region36: #{tpu_custom_call.1} parent=5 // pred_fallthru
        _
      %p260 = scmp.le.s32.totalorder 1, %s17
      %p261 = scmp.lt.s32.totalorder %s17, 3
      %p262 = pnand %p260, %p261
      %p263 = pneg %p262
      // Predicated region
      $region45: #{tpu_custom_call.1} parent=5 // pred_check
        _
      $region46: #{tpu_custom_call.1} parent=5 // pred_check_branch
        %265 = sbr.rel (%p262) target = $region48
      $region47: #{tpu_custom_call.1} parent=5 // pred_region
        %s266 = ssub.s32 %s17, 1
        // Predicated region
        $region49: #{tpu_custom_call.1} parent=47 // pred_check
          %p267 = pneg %p153
        $region50: #{tpu_custom_call.1} parent=47 // pred_check_branch
          %269 = sbr.rel (%p267) target = $region52
        $region51: #{tpu_custom_call.1} parent=47 // pred_region
          %271 = dma.done [#allocation3], 256
        $region52: #{tpu_custom_call.1} parent=47 // pred_fallthru
          _
        %p272 = scmp.lt.s32.totalorder %s22, 1
        %s273 = scalar_select %p272, %s22, 1
        %s274 = smul.addr %s273, 8
        %s275 = scalar_lea.vmem %s0, %s274
        %p276 = pneg %p43
        %p277 = pneg %p40
        %p278 = scmp.lt.s32.totalorder %s22, 1
        %s279 = scalar_select %p278, %s22, 1
        %s280 = smul.addr %s279, 2
        %s281 = smul.addr %s280, 8
        %s282 = scalar_lea.vmem %s1, %s281
        %p283 = pneg %p69
        %p284 = pneg %p66
        %p285 = pneg %p90
        %p286 = pneg %p87
        %p287 = pneg %p111
        %p288 = pneg %p108
        %p289 = pneg %p132
        %p290 = pneg %p129
        %p291 = pneg %p153
        %p292 = pneg %p150
        %p293 = pneg %p174
        %p294 = pneg %p171
        %p295 = pneg %p200
        %p296 = pneg %p197
        %s297 = sand.u32 %s187, 1
        %s298 = scalar_lea.sflag [#allocation4], %s297
        %s299 = sand.u32 %s187, 1
        %s300 = smul.addr %s299, 8
        %s301 = scalar_lea.vmem [#allocation5], %s300
        %p302 = scmp.lt.s32.totalorder %s22, 1
        %s303 = scalar_select %p302, %s22, 1
        %s304 = smul.addr %s303, 8
        %s305 = scalar_lea.vmem %s0, %s304
        %p306 = scmp.lt.s32.totalorder %s22, 1
        %s307 = scalar_select %p306, %s22, 1
        %s308 = smul.addr %s307, 2
        %s309 = smul.addr %s308, 8
        %s310 = scalar_lea.vmem %s1, %s309
        %v312 = vld [vmem:[%s305] sm:$0xff]
        %v313 = vpack.c.bf16 %v312, %v312
        %v314 = vld [vmem:[%s310] sm:$0xff]
        %v315 = vld [vmem:[%s310 + $0x8] sm:$0xff]
        %v316 = vpack.c.bf16 %v315, %v314
        %v317 = vld [vmem:[%s2] sm:$0xf]
        %v318 = vld [vmem:[%s2 + $0x4] sm:$0xf]
        %v319 = vld [vmem:[%s2 + $0x8] sm:$0xf]
        %v320 = vld [vmem:[%s2 + $0xc] sm:$0xf]
        %v325 = vunpack.c.l.b16 %v317
        %v326 = vunpack.c.l.b16 %v318
        %v327 = vunpack.c.l.b16 %v319
        %v328 = vunpack.c.l.b16 %v320
        %v329 = vpack.c.b16 %v326, %v325
        %v330 = vpack.c.b16 %v328, %v327
        %vm333 = vcmask 261120
        %v335 = vsel %vm333, %v313, 0
        %337 = vmatpush.bf16.msra.mxu0 0
        %338 = vmatpush.bf16.msra.mxu0 0
        %339 = vmatpush.bf16.msra.mxu0 0
        %340 = vmatpush.bf16.msra.mxu0 0
        %341 = vmatpush.bf16.msra.mxu0 0
        %342 = vmatpush.bf16.msra.mxu0 0
        %343 = vmatpush.bf16.msra.mxu0 %v330
        %344 = vmatpush.bf16.msra.mxu0 %v329
        %345 = vmatmul.bf16.gmra.mxu0 %v335
        %v346 = vpop.f32.mrf.mxu0
        %v347 = vadd.f32 0.0, %v346
        %v348 = vpop.f32.mrf.mxu0
        %349 = vdwg.mxu0
        %v350 = vmul.f32 %v347, 0.35355338
        %v351 = vpack.c.bf16 %v350, %v350
        %v352 = vld [vmem:[%s3] sm:$0xf]
        %v353 = vld [vmem:[%s3 + $0x4] sm:$0xf]
        %v354 = vld [vmem:[%s3 + $0x8] sm:$0xf]
        %v355 = vld [vmem:[%s3 + $0xc] sm:$0xf]
        %v356 = vld [vmem:[%s3 + $0x10] sm:$0xf]
        %v357 = vld [vmem:[%s3 + $0x14] sm:$0xf]
        %v364 = vunpack.c.l.b16 %v352
        %v365 = vunpack.c.l.b16 %v353
        %v366 = vunpack.c.l.b16 %v354
        %v367 = vunpack.c.l.b16 %v355
        %v368 = vunpack.c.l.b16 %v356
        %v369 = vunpack.c.l.b16 %v357
        %v370 = vpack.c.b16 %v365, %v364
        %v371 = vpack.c.b16 %v367, %v366
        %v372 = vpack.c.b16 %v369, %v368
        %vm376 = vcmask 392192
        %v378 = vsel %vm376, %v316, 0
        %380 = vmatpush.bf16.msra.mxu0 0
        %381 = vmatpush.bf16.msra.mxu0 0
        %382 = vmatpush.bf16.msra.mxu0 0
        %383 = vmatpush.bf16.msra.mxu0 0
        %384 = vmatpush.bf16.msra.mxu0 0
        %385 = vmatpush.bf16.msra.mxu0 %v372
        %386 = vmatpush.bf16.msra.mxu0 %v371
        %387 = vmatpush.bf16.msra.mxu0 %v370
        %388 = vmatmul.bf16.gmra.mxu0 %v378
        %v389 = vpop.f32.mrf.mxu0
        %v390 = vadd.f32 0.0, %v389
        %v391 = vpop.f32.mrf.mxu0
        %v392 = vadd.f32 0.0, %v391
        %393 = vdwg.mxu0
        %v394 = vpack.c.bf16 %v390, %v390
        %v395 = vpack.c.bf16 %v392, %v392
        %v396 = vld [vmem:[%s4] sm:$0xf]
        %v397 = vld [vmem:[%s4 + $0x4] sm:$0xf]
        %v398 = vld [vmem:[%s4 + $0x8] sm:$0xf]
        %v399 = vld [vmem:[%s4 + $0xc] sm:$0xf]
        %v400 = vld [vmem:[%s4 + $0x10] sm:$0xf]
        %v401 = vld [vmem:[%s4 + $0x14] sm:$0xf]
        %v408 = vunpack.c.l.b16 %v396
        %v409 = vunpack.c.l.b16 %v397
        %v410 = vunpack.c.l.b16 %v398
        %v411 = vunpack.c.l.b16 %v399
        %v412 = vunpack.c.l.b16 %v400
        %v413 = vunpack.c.l.b16 %v401
        %v414 = vpack.c.b16 %v409, %v408
        %v415 = vpack.c.b16 %v411, %v410
        %v416 = vpack.c.b16 %v413, %v412
        %420 = vmatpush.bf16.msra.mxu0 0
        %421 = vmatpush.bf16.msra.mxu0 0
        %422 = vmatpush.bf16.msra.mxu0 0
        %423 = vmatpush.bf16.msra.mxu0 0
        %424 = vmatpush.bf16.msra.mxu0 0
        %425 = vmatpush.bf16.msra.mxu0 %v416
        %426 = vmatpush.bf16.msra.mxu0 %v415
        %427 = vmatpush.bf16.msra.mxu0 %v414
        %428 = vmatmul.bf16.gmra.mxu0 %v378
        %v429 = vpop.f32.mrf.mxu0
        %v430 = vadd.f32 0.0, %v429
        %v431 = vpop.f32.mrf.mxu0
        %v432 = vadd.f32 0.0, %v431
        %433 = vdwg.mxu0
        %v434 = vpack.c.bf16 %v430, %v430
        %v435 = vpack.c.bf16 %v432, %v432
        %v438 = vunpack.c.l.b16 %v394
        %v439 = vunpack.c.l.b16 %v395
        %v440 = vpack.c.b16 %v439, %v438
        %vm441 = vcmask 64512
        %v443 = vsel %vm441, %v351, 0
        %v446 = vsel %vm441, %v440, 0
        %448 = vmatpush.bf16.xpose.msra.mxu0 0
        %449 = vmatpush.bf16.xpose.msra.mxu0 0
        %450 = vmatpush.bf16.xpose.msra.mxu0 0
        %451 = vmatpush.bf16.xpose.msra.mxu0 0
        %452 = vmatpush.bf16.xpose.msra.mxu0 0
        %453 = vmatpush.bf16.xpose.msra.mxu0 0
        %454 = vmatpush.bf16.xpose.msra.mxu0 0
        %455 = vmatpush.bf16.xpose.msra.mxu0 %v446
        %456 = vmatmul.bf16.gmra.mxu0 %v443
        %v457 = vpop.f32.mrf.mxu0
        %v458 = vadd.f32 0.0, %v457
        %v459 = vpop.f32.mrf.mxu0
        %460 = vdwg.mxu0
        %vm461 = vcmask 130048
        %v462 = vsel %vm461, %v458, -inf
        %463 = vmax.xlane.f32.xlu0 %v462
        %v464 = vpop.xlane.xlu0 %463
        %v465 = vsub.f32 %v458, %v464
        %v466 = vmul.f32 %v465, 1.442695
        %v467 = vpow.pop %v466
        %v468 = vsel %vm461, %v467, 0.0
        %469 = vadd.xlane.f32.xlu0 %v468
        %v470 = vpop.xlane.xlu0 %469
        %v471 = vrcp.pop %v470
        %v472 = vmul.f32 %v467, %v471
        %v473 = vpack.c.bf16 %v472, %v472
        %v476 = vunpack.c.l.b16 %v434
        %v477 = vunpack.c.l.b16 %v435
        %v478 = vpack.c.b16 %v477, %v476
        %v481 = vsel %vm461, %v473, 0
        %483 = vmatpush.bf16.msra.mxu0 0
        %484 = vmatpush.bf16.msra.mxu0 0
        %485 = vmatpush.bf16.msra.mxu0 0
        %486 = vmatpush.bf16.msra.mxu0 0
        %487 = vmatpush.bf16.msra.mxu0 0
        %488 = vmatpush.bf16.msra.mxu0 0
        %489 = vmatpush.bf16.msra.mxu0 0
        %490 = vmatpush.bf16.msra.mxu0 %v478
        %491 = vmatmul.bf16.gmra.mxu0 %v481
        %v492 = vpop.f32.mrf.mxu0
        %v493 = vadd.f32 0.0, %v492
        %v494 = vpop.f32.mrf.mxu0
        %495 = vdwg.mxu0
        %v496 = vpack.c.bf16 %v493, %v493
        %v497 = vld [vmem:[#allocation2] sm:$0xf]
        %v499 = vunpack.c.l.b16 %v351
        %v500 = vpack.c.b16 %v499, %v499
        %501 = vrot.lane.b32.xlu0 %v500, 120
        %v502 = vpop.permute.xlu0 %501
        %503 = vrot.lane.b32.xlu0 %v440, 120
        %v504 = vpop.permute.xlu0 %503
        %v506 = vsel %vm441, %v502, 0
        %v509 = vsel %vm441, %v504, 0
        %511 = vmatpush.bf16.xpose.msra.mxu0 0
        %512 = vmatpush.bf16.xpose.msra.mxu0 0
        %513 = vmatpush.bf16.xpose.msra.mxu0 0
        %514 = vmatpush.bf16.xpose.msra.mxu0 0
        %515 = vmatpush.bf16.xpose.msra.mxu0 0
        %516 = vmatpush.bf16.xpose.msra.mxu0 0
        %517 = vmatpush.bf16.xpose.msra.mxu0 0
        %518 = vmatpush.bf16.xpose.msra.mxu0 %v509
        %519 = vmatmul.bf16.gmra.mxu0 %v506
        %v520 = vpop.f32.mrf.mxu0
        %v521 = vadd.f32 0.0, %v520
        %v522 = vpop.f32.mrf.mxu0
        %523 = vdwg.mxu0
        %v524 = vsel %vm461, %v521, -inf
        %525 = vmax.xlane.f32.xlu0 %v524
        %v526 = vpop.xlane.xlu0 %525
        %v527 = vsub.f32 %v521, %v526
        %v528 = vmul.f32 %v527, 1.442695
        %v529 = vpow.pop %v528
        %v530 = vsel %vm461, %v529, 0.0
        %531 = vadd.xlane.f32.xlu0 %v530
        %v532 = vpop.xlane.xlu0 %531
        %v533 = vrcp.pop %v532
        %v534 = vmul.f32 %v529, %v533
        %v535 = vpack.c.bf16 %v534, %v534
        %536 = vrot.lane.b32.xlu0 %v478, 120
        %v537 = vpop.permute.xlu0 %536
        %v540 = vsel %vm461, %v535, 0
        %542 = vmatpush.bf16.msra.mxu0 0
        %543 = vmatpush.bf16.msra.mxu0 0
        %544 = vmatpush.bf16.msra.mxu0 0
        %545 = vmatpush.bf16.msra.mxu0 0
        %546 = vmatpush.bf16.msra.mxu0 0
        %547 = vmatpush.bf16.msra.mxu0 0
        %548 = vmatpush.bf16.msra.mxu0 0
        %549 = vmatpush.bf16.msra.mxu0 %v537
        %550 = vmatmul.bf16.gmra.mxu0 %v540
        %v551 = vpop.f32.mrf.mxu0
        %v552 = vadd.f32 0.0, %v551
        %v553 = vpop.f32.mrf.mxu0
        %554 = vdwg.mxu0
        %v555 = vpack.c.bf16 %v552, %v552
        %s556 = scalar_lea.vmem [#allocation2], 4
        %v557 = vld [vmem:[%s556] sm:$0xf]
        %v559 = vsel %vm441, %v555, 0
        %vm561 = vcmask 1043456
        %v563 = vsel %vm561, %v557, 0
        %565 = vmatpush.bf16.msra.mxu0 0
        %566 = vmatpush.bf16.msra.mxu0 0
        %567 = vmatpush.bf16.msra.mxu0 0
        %568 = vmatpush.bf16.msra.mxu0 0
        %569 = vmatpush.bf16.msra.mxu0 0
        %570 = vmatpush.bf16.msra.mxu0 0
        %571 = vmatpush.bf16.msra.mxu0 0
        %572 = vmatpush.bf16.msra.mxu0 %v563
        %573 = vmatmul.bf16.gmra.mxu0 %v559
        %v574 = vpop.f32.mrf.mxu0
        %v575 = vadd.f32 0.0, %v574
        %v576 = vpop.f32.mrf.mxu0
        %577 = vdwg.mxu0
        %v579 = vsel %vm441, %v496, 0
        %v582 = vsel %vm561, %v497, 0
        %584 = vmatpush.bf16.msra.mxu0 0
        %585 = vmatpush.bf16.msra.mxu0 0
        %586 = vmatpush.bf16.msra.mxu0 0
        %587 = vmatpush.bf16.msra.mxu0 0
        %588 = vmatpush.bf16.msra.mxu0 0
        %589 = vmatpush.bf16.msra.mxu0 0
        %590 = vmatpush.bf16.msra.mxu0 0
        %591 = vmatpush.bf16.msra.mxu0 %v582
        %592 = vmatmul.bf16.gmra.mxu0 %v579
        %v593 = vpop.f32.mrf.mxu0
        %v594 = vadd.f32 %v575, %v593
        %v595 = vpop.f32.mrf.mxu0
        %596 = vdwg.mxu0
        %597 = vrot.lane.b32.xlu0 %v500, 112
        %v598 = vpop.permute.xlu0 %597
        %599 = vrot.lane.b32.xlu0 %v440, 112
        %v600 = vpop.permute.xlu0 %599
        %v602 = vsel %vm441, %v598, 0
        %v605 = vsel %vm441, %v600, 0
        %607 = vmatpush.bf16.xpose.msra.mxu0 0
        %608 = vmatpush.bf16.xpose.msra.mxu0 0
        %609 = vmatpush.bf16.xpose.msra.mxu0 0
        %610 = vmatpush.bf16.xpose.msra.mxu0 0
        %611 = vmatpush.bf16.xpose.msra.mxu0 0
        %612 = vmatpush.bf16.xpose.msra.mxu0 0
        %613 = vmatpush.bf16.xpose.msra.mxu0 0
        %614 = vmatpush.bf16.xpose.msra.mxu0 %v605
        %615 = vmatmul.bf16.gmra.mxu0 %v602
        %v616 = vpop.f32.mrf.mxu0
        %v617 = vadd.f32 0.0, %v616
        %v618 = vpop.f32.mrf.mxu0
        %619 = vdwg.mxu0
        %v620 = vsel %vm461, %v617, -inf
        %621 = vmax.xlane.f32.xlu0 %v620
        %v622 = vpop.xlane.xlu0 %621
        %v623 = vsub.f32 %v617, %v622
        %v624 = vmul.f32 %v623, 1.442695
        %v625 = vpow.pop %v624
        %v626 = vsel %vm461, %v625, 0.0
        %627 = vadd.xlane.f32.xlu0 %v626
        %v628 = vpop.xlane.xlu0 %627
        %v629 = vrcp.pop %v628
        %v630 = vmul.f32 %v625, %v629
        %v631 = vpack.c.bf16 %v630, %v630
        %632 = vrot.lane.b32.xlu0 %v478, 112
        %v633 = vpop.permute.xlu0 %632
        %v636 = vsel %vm461, %v631, 0
        %638 = vmatpush.bf16.msra.mxu0 0
        %639 = vmatpush.bf16.msra.mxu0 0
        %640 = vmatpush.bf16.msra.mxu0 0
        %641 = vmatpush.bf16.msra.mxu0 0
        %642 = vmatpush.bf16.msra.mxu0 0
        %643 = vmatpush.bf16.msra.mxu0 0
        %644 = vmatpush.bf16.msra.mxu0 0
        %645 = vmatpush.bf16.msra.mxu0 %v633
        %646 = vmatmul.bf16.gmra.mxu0 %v636
        %v647 = vpop.f32.mrf.mxu0
        %v648 = vadd.f32 0.0, %v647
        %v649 = vpop.f32.mrf.mxu0
        %650 = vdwg.mxu0
        %v651 = vpack.c.bf16 %v648, %v648
        %s652 = scalar_lea.vmem [#allocation2], 8
        %v653 = vld [vmem:[%s652] sm:$0xf]
        %v655 = vsel %vm441, %v651, 0
        %v658 = vsel %vm561, %v653, 0
        %660 = vmatpush.bf16.msra.mxu0 0
        %661 = vmatpush.bf16.msra.mxu0 0
        %662 = vmatpush.bf16.msra.mxu0 0
        %663 = vmatpush.bf16.msra.mxu0 0
        %664 = vmatpush.bf16.msra.mxu0 0
        %665 = vmatpush.bf16.msra.mxu0 0
        %666 = vmatpush.bf16.msra.mxu0 0
        %667 = vmatpush.bf16.msra.mxu0 %v658
        %668 = vmatmul.bf16.gmra.mxu0 %v655
        %v669 = vpop.f32.mrf.mxu0
        %v670 = vadd.f32 0.0, %v669
        %v671 = vpop.f32.mrf.mxu0
        %672 = vdwg.mxu0
        %v673 = vadd.f32 %v594, %v670
        %674 = vrot.lane.b32.xlu0 %v500, 104
        %v675 = vpop.permute.xlu0 %674
        %676 = vrot.lane.b32.xlu0 %v440, 104
        %v677 = vpop.permute.xlu0 %676
        %v679 = vsel %vm441, %v675, 0
        %v682 = vsel %vm441, %v677, 0
        %684 = vmatpush.bf16.xpose.msra.mxu0 0
        %685 = vmatpush.bf16.xpose.msra.mxu0 0
        %686 = vmatpush.bf16.xpose.msra.mxu0 0
        %687 = vmatpush.bf16.xpose.msra.mxu0 0
        %688 = vmatpush.bf16.xpose.msra.mxu0 0
        %689 = vmatpush.bf16.xpose.msra.mxu0 0
        %690 = vmatpush.bf16.xpose.msra.mxu0 0
        %691 = vmatpush.bf16.xpose.msra.mxu0 %v682
        %692 = vmatmul.bf16.gmra.mxu0 %v679
        %v693 = vpop.f32.mrf.mxu0
        %v694 = vadd.f32 0.0, %v693
        %v695 = vpop.f32.mrf.mxu0
        %696 = vdwg.mxu0
        %v697 = vsel %vm461, %v694, -inf
        %698 = vmax.xlane.f32.xlu0 %v697
        %v699 = vpop.xlane.xlu0 %698
        %v700 = vsub.f32 %v694, %v699
        %v701 = vmul.f32 %v700, 1.442695
        %v702 = vpow.pop %v701
        %v703 = vsel %vm461, %v702, 0.0
        %704 = vadd.xlane.f32.xlu0 %v703
        %v705 = vpop.xlane.xlu0 %704
        %v706 = vrcp.pop %v705
        %v707 = vmul.f32 %v702, %v706
        %v708 = vpack.c.bf16 %v707, %v707
        %709 = vrot.lane.b32.xlu0 %v478, 104
        %v710 = vpop.permute.xlu0 %709
        %v713 = vsel %vm461, %v708, 0
        %715 = vmatpush.bf16.msra.mxu0 0
        %716 = vmatpush.bf16.msra.mxu0 0
        %717 = vmatpush.bf16.msra.mxu0 0
        %718 = vmatpush.bf16.msra.mxu0 0
        %719 = vmatpush.bf16.msra.mxu0 0
        %720 = vmatpush.bf16.msra.mxu0 0
        %721 = vmatpush.bf16.msra.mxu0 0
        %722 = vmatpush.bf16.msra.mxu0 %v710
        %723 = vmatmul.bf16.gmra.mxu0 %v713
        %v724 = vpop.f32.mrf.mxu0
        %v725 = vadd.f32 0.0, %v724
        %v726 = vpop.f32.mrf.mxu0
        %727 = vdwg.mxu0
        %v728 = vpack.c.bf16 %v725, %v725
        %s729 = scalar_lea.vmem [#allocation2], 12
        %v730 = vld [vmem:[%s729] sm:$0xf]
        %v732 = vsel %vm441, %v728, 0
        %v735 = vsel %vm561, %v730, 0
        %737 = vmatpush.bf16.msra.mxu0 0
        %738 = vmatpush.bf16.msra.mxu0 0
        %739 = vmatpush.bf16.msra.mxu0 0
        %740 = vmatpush.bf16.msra.mxu0 0
        %741 = vmatpush.bf16.msra.mxu0 0
        %742 = vmatpush.bf16.msra.mxu0 0
        %743 = vmatpush.bf16.msra.mxu0 0
        %744 = vmatpush.bf16.msra.mxu0 %v735
        %745 = vmatmul.bf16.gmra.mxu0 %v732
        %v746 = vpop.f32.mrf.mxu0
        %v747 = vadd.f32 0.0, %v746
        %v748 = vpop.f32.mrf.mxu0
        %749 = vdwg.mxu0
        %v750 = vadd.f32 %v673, %v747
        %v751 = vld [vmem:[%s6] sm:$0x1]
        %v753 = vperm.slane %v751, 0
        %v755 = vadd.f32 %v750, %v753
        %756 = vst.msk [vmem:[%s301] sm:$0xff] %vm333, %v755
        %s757 = sand.u32 %s187, 1
        %s758 = scalar_lea.sflag [#allocation4], %s757
        %s759 = sand.u32 %s187, 1
        %s760 = smul.addr %s759, 8
        %s761 = scalar_lea.vmem [#allocation5], %s760
        // Predicated region
        $region53: #{tpu_custom_call.1} parent=47 // pred_check
          %p762 = pneg %p197
        $region54: #{tpu_custom_call.1} parent=47 // pred_check_branch
          %764 = sbr.rel (%p762) target = $region56
        $region55: #{tpu_custom_call.1} parent=47 // pred_region
          %766 = vsyncadd %s758, 0
          %s767 = smul.addr %s22, 8
          %s768 = scalar_lea.hbm %s7, %s767
          %s770 = sshll.u32 %s761, 4
          %s771 = int_to_ptr.vmem [resolvable:$true] %s770
          %s772 = sshll.u32 %s768, 4
          %s773 = int_to_ptr.hbm [resolvable:$true] %s772
          %775 = dma.vmem_to_hbm [thread:$0]  %s771, 128, %s773, %s758
        $region56: #{tpu_custom_call.1} parent=47 // pred_fallthru
          _
      $region48: #{tpu_custom_call.1} parent=5 // pred_fallthru
        _
      %p776 = scmp.le.s32.totalorder 2, %s17
      // Predicated region
      $region57: #{tpu_custom_call.1} parent=5 // pred_check
        %p777 = pneg %p776
      $region58: #{tpu_custom_call.1} parent=5 // pred_check_branch
        %779 = sbr.rel (%p777) target = $region60
      $region59: #{tpu_custom_call.1} parent=5 // pred_region
        %s780 = ssub.s32 %s17, 2
        // Predicated region
        $region61: #{tpu_custom_call.1} parent=59 // pred_check
          %p781 = pneg %p203
        $region62: #{tpu_custom_call.1} parent=59 // pred_check_branch
          %783 = sbr.rel (%p781) target = $region64
        $region63: #{tpu_custom_call.1} parent=59 // pred_region
          %s784 = sand.u32 %s188, 1
          %s785 = scalar_lea.sflag [#allocation4], %s784
          %s786 = sand.u32 %s188, 1
          %s787 = smul.addr %s786, 8
          %s788 = scalar_lea.vmem [#allocation5], %s787
          %790 = dma.done %s785, 128
        $region64: #{tpu_custom_call.1} parent=59 // pred_fallthru
          _
      $region60: #{tpu_custom_call.1} parent=5 // pred_fallthru
        _
    $region6: #{tpu_custom_call.1} parent=1 // loop_footer
      %s21 = sadd.s32 1, %s17
    $region7: #{tpu_custom_call.1} parent=1 // loop_footer_branch
      %16 = sbr.rel target = $region3
    $region8: #{tpu_custom_call.1} parent=1 // loop_exit
      _
    %791 = vsyncpa [#allocation3], 1
    %s792 = scalar_lea.sflag [#allocation3], 1
    %793 = vsyncpa %s792, 1
    %794 = vsyncpa [#allocation4], 1
    %s795 = scalar_lea.sflag [#allocation4], 1
    %796 = vsyncpa %s795, 1

</llo_original>
